<compile_context>
chip_gen: v6e
topology: v6e:2x2x1
jax: 0.10.0
libtpu: 0.0.40
codegen_flags: <defaults>
</compile_context>

<pallas_src>
import functools

import jax
import jax.numpy as jnp
from jax import lax
from jax.experimental import pallas as pl
from jax.experimental.pallas import tpu as pltpu


def _round_up(a, m):
    return (a + m - 1) // m * m


def _bf16_exp_ok():
    """bf16 EUP exists on v6e/v7x; keep f32 exp on v5e and older."""
    try:
        kind = jax.devices()[0].device_kind.lower()
    except Exception:
        return False
    return ("v6" in kind) or ("v7" in kind)


def _vmem_capacity_bytes():
    try:
        return int(pltpu.get_tpu_info().vmem_capacity_bytes)
    except Exception:
        return 64 * 1024 * 1024  # conservative (v7x per-TC size)


def _self_attention_kernel(x_ref, w_ref, b_ref, gamma_ref, o_ref, qkv_ref, *,
                           c8p, cvp, c, tq, n_valid, nk_chunk, use_bf16_exp):
    t = pl.program_id(1)
    n_pad = qkv_ref.shape[1]

    # Once per batch element: fused q/k/v (+denominator ones-row) projection of the
    # whole (C, Npad) slab, chunked along the lane axis to bound the f32 temporary.
    @pl.when(t == 0)
    def _():
        for ck in range(n_pad // nk_chunk):
            lo = ck * nk_chunk
            xb = x_ref[0, :, lo:lo + nk_chunk].astype(jnp.bfloat16)      # (C, chunk)
            qkv = jnp.dot(w_ref[...], xb,
                          preferred_element_type=jnp.float32)            # (Mp, chunk)
            qkv_ref[:, lo:lo + nk_chunk] = (qkv + b_ref[...]).astype(jnp.bfloat16)

    q_off = pl.multiple_of(t * tq, tq)
    q_t = qkv_ref[pl.ds(0, c8p), pl.ds(q_off, tq)]                        # (C8p, TQ)  bf16
    k = qkv_ref[pl.ds(c8p, c8p), :]                                       # (C8p, Npad) bf16
    v_ext = qkv_ref[pl.ds(2 * c8p, cvp), :]                               # (Cvp, Npad) bf16 (row c == 1.0)

    # energy[i, j] = sum_c q[c, i] * k[c, j]  (transposed-LHS MXU matmul, f32 acc)
    energy = lax.dot_general(
        q_t, k, dimension_numbers=(((0,), (0,)), ((), ())),
        preferred_element_type=jnp.float32)                               # (TQ, Npad) f32

    # Mask padded key columns (compiled out when N is already a multiple of 128).
    if n_valid < n_pad:
        key_idx = lax.broadcasted_iota(jnp.int32, (tq, n_pad), 1)
        energy = jnp.where(key_idx < n_valid, energy, -1e30)

    e_max = jnp.max(energy, axis=-1, keepdims=True)
    z = energy - e_max
    if use_bf16_exp:
        p = jnp.exp(z.astype(jnp.bfloat16))                               # bf16 EUP (v6e/v7x)
    else:
        p = jnp.exp(z).astype(jnp.bfloat16)                               # single bf16 cast

    # out_full[c, i] = sum_j v_ext[c, j] * p[i, j]; the all-ones row of v_ext makes
    # row `c` of out_full the softmax denominator, already in (1, TQ) lane layout.
    out_full = lax.dot_general(
        v_ext, p, dimension_numbers=(((1,), (1,)), ((), ())),
        preferred_element_type=jnp.float32)                               # (Cvp, TQ) f32

    inv = pl.reciprocal(out_full[c:c + 1, :], approx=False)               # (1, TQ)
    out_t = out_full[:c, :] * inv                                         # (C, TQ)

    x_t = x_ref[0, :, pl.ds(q_off, tq)]                                   # (C, TQ) residual
    o_ref[0] = (gamma_ref[0] * out_t + x_t).astype(o_ref.dtype)


def self_attention(x, wq, bq, wk, bk, wv, bv, gamma, *, tq=None):
    """gamma * SAGAN-attention(x) + x, with 1x1-conv projection weights."""
    B, C, H, W = x.shape
    N = H * W
    C8 = wq.shape[0]

    # 1x1 convs -> plain (out, in) matmuls on the channel axis.
    wq2 = wq.reshape(C8, C)
    wk2 = wk.reshape(C8, C)
    wv2 = wv.reshape(C, C)

    # Pad q/k output-channel blocks to a multiple of 16 rows (bf16 sublane tile).
    # The V block gets C rows + 1 all-ones row (softmax denominator) + zero padding
    # to the next multiple of 16, so every scratch slice stays tile-aligned.
    c8p = _round_up(max(C8, 1), 16)
    cvp = _round_up(C + 1, 16)

    def _pad_rows(w2, b1, rows):
        wp = jnp.zeros((rows, C), jnp.float32).at[:w2.shape[0], :].set(w2)
        bp = jnp.zeros((rows,), jnp.float32).at[:b1.shape[0]].set(b1)
        return wp, bp

    wq_p, bq_p = _pad_rows(wq2, bq, c8p)
    wk_p, bk_p = _pad_rows(wk2, bk, c8p)
    wv_p, bv_p = _pad_rows(wv2, bv, cvp)
    bv_p = bv_p.at[C].set(1.0)                 # ones-row: weight 0, bias 1 -> const 1
    w_fused = jnp.concatenate([wq_p, wk_p, wv_p], axis=0).astype(jnp.bfloat16)
    b_fused = jnp.concatenate([bq_p, bk_p, bv_p], axis=0).astype(jnp.float32)
    b_fused = b_fused.reshape(-1, 1)
    mp = 2 * c8p + cvp

    # Pad the spatial axis to a multiple of 128 -> lane-dense 128-wide query tiles.
    n_pad = _round_up(N, 128)
    if tq is None:
        tq = 256
    tq = max(128, (min(int(tq), n_pad) // 128) * 128)
    while n_pad % tq:
        tq -= 128
    num_t = n_pad // tq

    # Chunk size for the t==0 qkv projection (bounds the f32 temporary).
    nk_chunk = min(n_pad, 1024)
    while n_pad % nk_chunk:
        nk_chunk -= 128

    x_flat = x.reshape(B, C, N)
    if n_pad != N:
        x_flat = jnp.pad(x_flat, ((0, 0), (0, 0), (0, n_pad - N)))
    gamma_arr = jnp.asarray(gamma, jnp.float32).reshape(1)

    # Scoped-VMEM limit sized from the actual footprint, clamped generation-aware.
    vmem_bytes = (2 * C * n_pad * 4            # x block, double-buffered
                  + 2 * C * tq * 4             # out block, double-buffered
                  + 2 * (mp * C * 2 + mp * 4)  # fused weight + bias
                  + mp * n_pad * 2             # bf16 qkv scratch
                  + 3 * tq * n_pad * 4         # energy / exp temporaries headroom
                  + mp * nk_chunk * 4          # projection chunk temporary
                  + 2 * cvp * tq * 4)          # PV output + scaled copy
    vmem_limit = int(min(max(2 * vmem_bytes, 16 * 1024 * 1024),
                         int(0.72 * _vmem_capacity_bytes())))

    cost = pl.CostEstimate(
        flops=int(2 * B * (mp * C * n_pad + (c8p + cvp) * n_pad * n_pad)),
        transcendentals=int(B * n_pad * n_pad),
        bytes_accessed=int(2 * B * C * n_pad * 4 + mp * C * 2 + mp * 4))

    kernel = functools.partial(
        _self_attention_kernel, c8p=c8p, cvp=cvp, c=C, tq=tq, n_valid=N,
        nk_chunk=nk_chunk, use_bf16_exp=_bf16_exp_ok())

    out_flat = pl.pallas_call(
        kernel,
        out_shape=jax.ShapeDtypeStruct((B, C, n_pad), x.dtype),
        grid_spec=pltpu.PrefetchScalarGridSpec(
            num_scalar_prefetch=0,
            grid=(B, num_t),
            in_specs=[
                pl.BlockSpec((1, C, n_pad), lambda b, t: (b, 0, 0)),   # x, resident per batch
                pl.BlockSpec((mp, C), lambda b, t: (0, 0)),            # fused qkv weight (bf16)
                pl.BlockSpec((mp, 1), lambda b, t: (0, 0)),            # fused qkv bias (f32)
                pl.BlockSpec(memory_space=pltpu.MemorySpace.SMEM),     # gamma scalar
            ],
            out_specs=pl.BlockSpec((1, C, tq), lambda b, t: (b, 0, t)),
            scratch_shapes=[pltpu.VMEM((mp, n_pad), jnp.bfloat16)],
        ),
        compiler_params=pltpu.CompilerParams(
            dimension_semantics=("parallel", "arbitrary"),
            vmem_limit_bytes=vmem_limit),
        cost_estimate=cost,
    )(x_flat, w_fused, b_fused, gamma_arr)

    return out_flat[:, :, :N].reshape(B, C, H, W)


def self_attention_ref(x, wq, bq, wk, bk, wv, bv, gamma):
    B, C, H, W = x.shape
    N = H * W
    xf = x.reshape(B, C, N)
    wq2 = wq.reshape(wq.shape[0], C)
    wk2 = wk.reshape(wk.shape[0], C)
    wv2 = wv.reshape(C, C)
    q = jnp.einsum("oc,bcn->bon", wq2, xf) + bq[None, :, None]
    k = jnp.einsum("oc,bcn->bon", wk2, xf) + bk[None, :, None]
    v = jnp.einsum("oc,bcn->bon", wv2, xf) + bv[None, :, None]
    energy = jnp.einsum("bci,bcj->bij", q, k)
    attn = jax.nn.softmax(energy, axis=-1)
    out = jnp.einsum("bcj,bij->bci", v, attn)
    return gamma * out.reshape(B, C, H, W) + x


def _make_inputs(key, B, C, H, W):
    C8 = max(C // 8, 1)
    ks = jax.random.split(key, 7)
    x = jax.random.normal(ks[0], (B, C, H, W), dtype=jnp.float32)
    # nn.Conv2d(C, out, 1): weight (out, C, 1, 1), bias (out,), fan_in = C.
    s = 1.0 / (C ** 0.5)
    wq = jax.random.uniform(ks[1], (C8, C, 1, 1), jnp.float32, -s, s)
    bq = jax.random.uniform(ks[2], (C8,), jnp.float32, -s, s)
    wk = jax.random.uniform(ks[3], (C8, C, 1, 1), jnp.float32, -s, s)
    bk = jax.random.uniform(ks[4], (C8,), jnp.float32, -s, s)
    wv = jax.random.uniform(ks[5], (C, C, 1, 1), jnp.float32, -s, s)
    bv = jax.random.uniform(ks[6], (C,), jnp.float32, -s, s)
    return x, wq, bq, wk, bk, wv, bv


if __name__ == "__main__":
    key = jax.random.PRNGKey(0)
    k1, k2 = jax.random.split(key)

    # gamma initializes to 0 in the module; use a nonzero value so the attention
    # path actually contributes to the checked output.
    gamma = jnp.float32(0.75)

    # Check 1: N = 16*16 = 256 -> two lane-dense 128-wide query tiles per batch
    # (exercises the scratch-carried qkv across the inner grid axis).
    args1 = _make_inputs(k1, 2, 32, 16, 16)
    fn1 = jax.jit(functools.partial(self_attention, tq=128))
    out1 = jax.block_until_ready(fn1(*args1, gamma))
    ref1 = self_attention_ref(*args1, gamma)
    assert out1.shape == ref1.shape
    err1 = float(jnp.max(jnp.abs(out1 - ref1)))
    assert jnp.allclose(out1, ref1, atol=3e-2, rtol=3e-2), \
        f"mismatch vs reference, 16x16 case (max abs err {err1})"

    # Check 2: N = 12*12 = 144 (not a multiple of 128) -> padded query/key axis
    # with masked padded keys, single 256-wide tile (exercises the ragged path).
    args2 = _make_inputs(k2, 2, 16, 12, 12)
    fn2 = jax.jit(self_attention)
    out2 = jax.block_until_ready(fn2(*args2, gamma))
    ref2 = self_attention_ref(*args2, gamma)
    assert out2.shape == ref2.shape
    err2 = float(jnp.max(jnp.abs(out2 - ref2)))
    assert jnp.allclose(out2, ref2, atol=3e-2, rtol=3e-2), \
        f"mismatch vs reference, 12x12 padded case (max abs err {err2})"

    print("KERNEL_OK")
</pallas_src>

<mosaic_0001>
module attributes {stable_mosaic.version = 11 : i64} {
  func.func @_self_attention_kernel(%arg0: i32, %arg1: i32, %arg2: memref<1x32x256xf32, #tpu.memory_space<vmem>>, %arg3: memref<80x32xbf16, #tpu.memory_space<vmem>>, %arg4: memref<80x1xf32, #tpu.memory_space<vmem>>, %arg5: memref<1xf32, #tpu.memory_space<smem>>, %arg6: memref<1x32x128xf32, #tpu.memory_space<vmem>>, %arg7: memref<80x256xbf16, #tpu.memory_space<vmem>>) attributes {dimension_semantics = [#tpu.dimension_semantics<parallel>, #tpu.dimension_semantics<arbitrary>], iteration_bounds = array<i64: 2, 2>, scalar_prefetch = 0 : i64, scratch_operands = 1 : i64, tpu.core_type = #tpu.core_type<tc>, window_params = [{transform_indices = @transform_0, window_bounds = array<i64: 1, 32, 256>}, {pipeline_mode = #tpu.pipeline_mode<synchronous>, transform_indices = @transform_1, window_bounds = array<i64: 80, 32>}, {pipeline_mode = #tpu.pipeline_mode<synchronous>, transform_indices = @transform_2, window_bounds = array<i64: 80, 1>}, {transform_indices = @transform_3, window_bounds = array<i64: 1>}, {transform_indices = @transform_4, window_bounds = array<i64: 1, 32, 128>}]} {
    %c0_i32 = arith.constant 0 : i32
    %0 = arith.cmpi eq, %arg1, %c0_i32 : i32
    %1 = arith.extui %0 : i1 to i32
    %c0_i32_0 = arith.constant 0 : i32
    %2 = arith.cmpi ne, %1, %c0_i32_0 : i32
    scf.if %2 {
      %c0_11 = arith.constant 0 : index
      %c0_12 = arith.constant 0 : index
      %c0_13 = arith.constant 0 : index
      %32 = vector.load %arg2[%c0_11, %c0_12, %c0_13] : memref<1x32x256xf32, #tpu.memory_space<vmem>>, vector<1x32x256xf32>
      %33 = vector.shape_cast %32 : vector<1x32x256xf32> to vector<32x256xf32>
      %34 = arith.truncf %33 : vector<32x256xf32> to vector<32x256xbf16>
      %c0_14 = arith.constant 0 : index
      %c0_15 = arith.constant 0 : index
      %35 = vector.load %arg3[%c0_14, %c0_15] : memref<80x32xbf16, #tpu.memory_space<vmem>>, vector<80x32xbf16>
      %cst_16 = arith.constant dense<0.000000e+00> : vector<80x256xf32>
      %36 = tpu.matmul %35, %34, %cst_16 {dimension_numbers = #tpu.dot_dimension_numbers<[1], [0], [0], [1], [0, 0, 1, 1], [], []>} : vector<80x32xbf16>, vector<32x256xbf16>, vector<80x256xf32> -> vector<80x256xf32>
      %c0_17 = arith.constant 0 : index
      %c0_18 = arith.constant 0 : index
      %37 = vector.load %arg4[%c0_17, %c0_18] : memref<80x1xf32, #tpu.memory_space<vmem>>, vector<80x1xf32>
      %38 = vector.broadcast %37 : vector<80x1xf32> to vector<80x256xf32>
      %39 = arith.addf %36, %38 : vector<80x256xf32>
      %40 = arith.truncf %39 : vector<80x256xf32> to vector<80x256xbf16>
      %c0_19 = arith.constant 0 : index
      %c0_20 = arith.constant 0 : index
      %41 = vector.load %arg7[%c0_19, %c0_20] : memref<80x256xbf16, #tpu.memory_space<vmem>>, vector<80x256xbf16>
      tpu.vector_store %arg7[%c0_19, %c0_20], %40 {strides = array<i32>} : memref<80x256xbf16, #tpu.memory_space<vmem>>, vector<80x256xbf16>,
    } else {
    }
    %c128_i32 = arith.constant 128 : i32
    %3 = arith.muli %arg1, %c128_i32 : i32
    %4 = tpu.assume_multiple %3, 128 : i32
    %c0 = arith.constant 0 : index
    %5 = arith.index_cast %4 : i32 to index
    %6 = vector.load %arg7[%c0, %5] : memref<80x256xbf16, #tpu.memory_space<vmem>>, vector<16x128xbf16>
    %c16 = arith.constant 16 : index
    %c0_1 = arith.constant 0 : index
    %7 = vector.load %arg7[%c16, %c0_1] : memref<80x256xbf16, #tpu.memory_space<vmem>>, vector<16x256xbf16>
    %c32 = arith.constant 32 : index
    %c0_2 = arith.constant 0 : index
    %8 = vector.load %arg7[%c32, %c0_2] : memref<80x256xbf16, #tpu.memory_space<vmem>>, vector<48x256xbf16>
    %cst = arith.constant dense<0.000000e+00> : vector<128x256xf32>
    %9 = tpu.matmul %6, %7, %cst {dimension_numbers = #tpu.dot_dimension_numbers<[0], [0], [1], [1], [0, 1, 1, 1], [], []>} : vector<16x128xbf16>, vector<16x256xbf16>, vector<128x256xf32> -> vector<128x256xf32>
    %cst_3 = arith.constant dense<0xFF800000> : vector<128xf32>
    %10 = vector.multi_reduction <maximumf>, %9, %cst_3 [1] : vector<128x256xf32> to vector<128xf32>
    %11 = vector.shape_cast %10 : vector<128xf32> to vector<128x1xf32>
    %12 = vector.broadcast %11 : vector<128x1xf32> to vector<128x256xf32>
    %13 = arith.subf %9, %12 : vector<128x256xf32>
    %14 = math.exp %13 : vector<128x256xf32>
    %15 = arith.truncf %14 : vector<128x256xf32> to vector<128x256xbf16>
    %cst_4 = arith.constant dense<0.000000e+00> : vector<48x128xf32>
    %16 = tpu.matmul %8, %15, %cst_4 {dimension_numbers = #tpu.dot_dimension_numbers<[1], [1], [0], [0], [0, 0, 1, 0], [], []>} : vector<48x256xbf16>, vector<128x256xbf16>, vector<48x128xf32> -> vector<48x128xf32>
    %17 = vector.extract_strided_slice %16 {offsets = [32, 0], sizes = [1, 128], strides = [1, 1]} : vector<48x128xf32> to vector<1x128xf32>
    %18 = tpu.reciprocal %17 : vector<1x128xf32> -> vector<1x128xf32>
    %19 = vector.extract_strided_slice %16 {offsets = [0, 0], sizes = [32, 128], strides = [1, 1]} : vector<48x128xf32> to vector<32x128xf32>
    %20 = vector.broadcast %18 : vector<1x128xf32> to vector<32x128xf32>
    %21 = arith.mulf %19, %20 : vector<32x128xf32>
    %c0_5 = arith.constant 0 : index
    %c0_6 = arith.constant 0 : index
    %22 = arith.index_cast %4 : i32 to index
    %23 = vector.load %arg2[%c0_5, %c0_6, %22] : memref<1x32x256xf32, #tpu.memory_space<vmem>>, vector<1x32x128xf32>
    %24 = vector.shape_cast %23 : vector<1x32x128xf32> to vector<32x128xf32>
    %c0_7 = arith.constant 0 : index
    %25 = memref.load %arg5[%c0_7] : memref<1xf32, #tpu.memory_space<smem>>
    %26 = vector.broadcast %25 : f32 to vector<32x128xf32>
    %27 = arith.mulf %26, %21 : vector<32x128xf32>
    %28 = arith.addf %27, %24 : vector<32x128xf32>
    %c0_8 = arith.constant 0 : index
    %c0_9 = arith.constant 0 : index
    %c0_10 = arith.constant 0 : index
    %29 = vector.load %arg6[%c0_8, %c0_9, %c0_10] : memref<1x32x128xf32, #tpu.memory_space<vmem>>, vector<1x32x128xf32>
    %30 = vector.shape_cast %29 : vector<1x32x128xf32> to vector<32x128xf32>
    %31 = vector.shape_cast %28 : vector<32x128xf32> to vector<1x32x128xf32>
    tpu.vector_store %arg6[%c0_8, %c0_9, %c0_10], %31 {strides = array<i32>} : memref<1x32x128xf32, #tpu.memory_space<vmem>>, vector<1x32x128xf32>,
    return
  }
  func.func @transform_0(%arg0: i32, %arg1: i32) -> (i32, i32, i32) {
    %c0_i32 = arith.constant 0 : i32
    %c0_i32_0 = arith.constant 0 : i32
    %c0_i32_1 = arith.constant 0 : i32
    return %arg0, %c0_i32, %c0_i32_0 : i32, i32, i32
  }
  func.func @transform_1(%arg0: i32, %arg1: i32) -> (i32, i32) {
    %c0_i32 = arith.constant 0 : i32
    %c0_i32_0 = arith.constant 0 : i32
    %c0_i32_1 = arith.constant 0 : i32
    return %c0_i32, %c0_i32_0 : i32, i32
  }
  func.func @transform_2(%arg0: i32, %arg1: i32) -> (i32, i32) {
    %c0_i32 = arith.constant 0 : i32
    %c0_i32_0 = arith.constant 0 : i32
    %c0_i32_1 = arith.constant 0 : i32
    return %c0_i32, %c0_i32_0 : i32, i32
  }
  func.func @transform_3(%arg0: i32, %arg1: i32) -> i32 {
    %c0_i32 = arith.constant 0 : i32
    %c0_i32_0 = arith.constant 0 : i32
    return %c0_i32 : i32
  }
  func.func @transform_4(%arg0: i32, %arg1: i32) -> (i32, i32, i32) {
    %c0_i32 = arith.constant 0 : i32
    %c0_i32_0 = arith.constant 0 : i32
    return %arg0, %c0_i32, %arg1 : i32, i32, i32
  }
}

</mosaic_0001>

<llo_original>
// kernel: self_attention.1
$region0: #{self_attention.1}
  #allocation0 [shape = 'u32[]', space=smem, size = 0x4, offset = 0x4, fixed_abs, tag = 'smem constant byte address 0x4 - core index']
  #allocation1 [shape = 'u32[144,128]{1,0:T(1,128)}', space=vmem, size = 0x12000, scoped, tag = 'internal scratch']
  #allocation2 [shape = 'bf16[80,256]{1,0:T(8,128)(2,1)}', space=vmem, size = 0xa000, scoped, tag = 'scratch operand']
  #allocation3 [shape = 'f32[1]{0:T(128)S(6)}', space=smem, size = 0x200, scoped, tag = 'scoped memory for self_attention.1']
  %s0 = inlined_call_operand.vmem [shape: f32[2,32,256], index: 0, kind: input, shape index: {}]
  %s1 = inlined_call_operand.vmem [shape: bf16[80,32], index: 1, kind: input, shape index: {}]
  %s2 = inlined_call_operand.vmem [shape: f32[80,1], index: 2, kind: input, shape index: {}]
  %s3 = inlined_call_operand.<no memory space> [shape: f32[1], index: 3, kind: input, shape index: {}]
  %s4 = inlined_call_operand.vmem [shape: f32[2,32,256], index: 4, kind: output, shape index: {}]
  %s5 = sld [smem:[#allocation0]]
  $region87: #{self_attention.1} parent=0
    _
  %s7 = ssub.s32 1, %s5
  %s8 = scalar_select 0, %s7, %s5
  %9 = sst [smem:[#allocation3]] %s3
  $region1: #{self_attention.1} parent=0
    #allocation4 [shape = 'u8[32768]{0}', space=vmem, size = 0x8000, scoped, tag = 'output window, operand 0']
    loop: start=0, step=1, limit=6
    $region2: #{self_attention.1} parent=1 // loop_pre_header
      _
    $region3: #{self_attention.1} parent=1 // loop_header
      %s11 = sphi 0, %s15
      %p12 = scmp.ge.s32.totalorder %s11, 6
      %s18 = sphi 0, %s30
      %s19 = sphi 0, %s26
      %s20 = sphi 0, %s18
      %s21 = sphi 0, %s19
      %s22 = sphi 0, %s20
      %s23 = sphi 0, %s21
      %s33 = sphi 0, %s35
      %s36 = sphi 0, %s33
      %s37 = sphi 0, %s36
      %s53 = sphi 0, %s37
      %s57 = sphi 0, %s57
      %s59 = sphi 0, %s57
      %s60 = sphi 0, %s59
      %s74 = sphi 0, %s60
      %s78 = sphi 0, %s78
      %s80 = sphi 0, %s78
      %s81 = sphi 0, %s80
      %s95 = sphi 0, %s81
      %s99 = sphi 0, %s99
      %s101 = sphi 0, %s99
      %s102 = sphi 0, %s101
      %s116 = sphi 0, %s102
      %s124 = sphi 0, %s126
      %s127 = sphi 0, %s124
      %s128 = sphi 0, %s127
      %s144 = sphi 0, %s128
    $region4: #{self_attention.1} parent=1 // loop_header_branch
      %14 = sbr.rel (%p12) target = $region8
    $region5: #{self_attention.1} parent=1 // loop_body
      %s16 = ssub.s32 %s11, 1
      %s17 = ssub.s32 %s11, 2
      %s24 = sadd.s32 1, %s19
      %p25 = scmp.ge.s32.totalorder %s24, 2
      %s26 = scalar_select %p25, 0, %s24
      %s27 = sadd.s32 1, %s18
      %s28 = scalar_select %p25, %s27, %s18
      %p29 = scmp.ge.s32.totalorder %s28, 2
      %s30 = scalar_select %p29, 0, %s28
      %s31 = ssub.s32 %s18, %s30
      %p32 = scmp.eq.s32.totalorder %s31, 0
      %s34 = sadd.s32 %s33, 1
      %s35 = scalar_select %p32, %s33, %s34
      %p38 = pneg %p32
      %p39 = scmp.eq.s32.totalorder %s11, 3
      %p40 = por %p38, %p39
      %p41 = scmp.ne.s32.totalorder %s33, %s36
      %p42 = scmp.eq.s32.totalorder %s11, 0
      %p43 = por %p41, %p42
      %p44 = scmp.ne.s32.totalorder %s33, %s36
      %p45 = scmp.eq.s32.totalorder %s16, 3
      %p46 = por %p44, %p45
      %p47 = scmp.ne.s32.totalorder %s36, %s37
      %p48 = scmp.eq.s32.totalorder %s16, 0
      %p49 = por %p47, %p48
      %p50 = scmp.ne.s32.totalorder %s36, %s37
      %p51 = scmp.eq.s32.totalorder %s17, 3
      %p52 = por %p50, %p51
      %p54 = scmp.ne.s32.totalorder %s37, %s53
      %p55 = scmp.eq.s32.totalorder %s17, 0
      %p56 = por %p54, %p55
      %s58 = sadd.s32 %s57, 1
      %p61 = scmp.eq.s32.totalorder %s11, 3
      %p62 = scmp.ne.s32.totalorder %s57, %s59
      %p63 = scmp.eq.s32.totalorder %s11, 0
      %p64 = por %p62, %p63
      %p65 = scmp.ne.s32.totalorder %s57, %s59
      %p66 = scmp.eq.s32.totalorder %s16, 3
      %p67 = por %p65, %p66
      %p68 = scmp.ne.s32.totalorder %s59, %s60
      %p69 = scmp.eq.s32.totalorder %s16, 0
      %p70 = por %p68, %p69
      %p71 = scmp.ne.s32.totalorder %s59, %s60
      %p72 = scmp.eq.s32.totalorder %s17, 3
      %p73 = por %p71, %p72
      %p75 = scmp.ne.s32.totalorder %s60, %s74
      %p76 = scmp.eq.s32.totalorder %s17, 0
      %p77 = por %p75, %p76
      %s79 = sadd.s32 %s78, 1
      %p82 = scmp.eq.s32.totalorder %s11, 3
      %p83 = scmp.ne.s32.totalorder %s78, %s80
      %p84 = scmp.eq.s32.totalorder %s11, 0
      %p85 = por %p83, %p84
      %p86 = scmp.ne.s32.totalorder %s78, %s80
      %p87 = scmp.eq.s32.totalorder %s16, 3
      %p88 = por %p86, %p87
      %p89 = scmp.ne.s32.totalorder %s80, %s81
      %p90 = scmp.eq.s32.totalorder %s16, 0
      %p91 = por %p89, %p90
      %p92 = scmp.ne.s32.totalorder %s80, %s81
      %p93 = scmp.eq.s32.totalorder %s17, 3
      %p94 = por %p92, %p93
      %p96 = scmp.ne.s32.totalorder %s81, %s95
      %p97 = scmp.eq.s32.totalorder %s17, 0
      %p98 = por %p96, %p97
      %s100 = sadd.s32 %s99, 1
      %p103 = scmp.eq.s32.totalorder %s11, 3
      %p104 = scmp.ne.s32.totalorder %s99, %s101
      %p105 = scmp.eq.s32.totalorder %s11, 0
      %p106 = por %p104, %p105
      %p107 = scmp.ne.s32.totalorder %s99, %s101
      %p108 = scmp.eq.s32.totalorder %s16, 3
      %p109 = por %p107, %p108
      %p110 = scmp.ne.s32.totalorder %s101, %s102
      %p111 = scmp.eq.s32.totalorder %s16, 0
      %p112 = por %p110, %p111
      %p113 = scmp.ne.s32.totalorder %s101, %s102
      %p114 = scmp.eq.s32.totalorder %s17, 3
      %p115 = por %p113, %p114
      %p117 = scmp.ne.s32.totalorder %s102, %s116
      %p118 = scmp.eq.s32.totalorder %s17, 0
      %p119 = por %p117, %p118
      %s120 = ssub.s32 %s18, %s30
      %s121 = ssub.s32 %s19, %s26
      %s122 = sor.u32 %s120, %s121
      %p123 = scmp.eq.s32.totalorder %s122, 0
      %s125 = sadd.s32 %s124, 1
      %s126 = scalar_select %p123, %s124, %s125
      %p129 = pneg %p123
      %p130 = scmp.eq.s32.totalorder %s11, 3
      %p131 = por %p129, %p130
      %p132 = scmp.ne.s32.totalorder %s124, %s127
      %p133 = scmp.eq.s32.totalorder %s11, 0
      %p134 = por %p132, %p133
      %p135 = scmp.ne.s32.totalorder %s124, %s127
      %p136 = scmp.eq.s32.totalorder %s16, 3
      %p137 = por %p135, %p136
      %p138 = scmp.ne.s32.totalorder %s127, %s128
      %p139 = scmp.eq.s32.totalorder %s16, 0
      %p140 = por %p138, %p139
      %p141 = scmp.ne.s32.totalorder %s127, %s128
      %p142 = scmp.eq.s32.totalorder %s17, 3
      %p143 = por %p141, %p142
      %p145 = scmp.ne.s32.totalorder %s128, %s144
      %p146 = scmp.eq.s32.totalorder %s17, 0
      %p147 = por %p145, %p146
      %p148 = scmp.le.s32.totalorder 1, %s11
      %p149 = scmp.lt.s32.totalorder %s11, 5
      %p150 = pnand %p148, %p149
      %p151 = pneg %p150
      // Predicated region
      $region9: #{self_attention.1} parent=5 // pred_check
        _
      $region10: #{self_attention.1} parent=5 // pred_check_branch
        %153 = sbr.rel (%p150) target = $region12
      $region11: #{self_attention.1} parent=5 // pred_region
        %s154 = ssub.s32 %s11, 1
        // Predicated region
        $region13: #{self_attention.1} parent=11 // pred_check
          %p155 = pneg %p70
        $region14: #{self_attention.1} parent=11 // pred_check_branch
          %157 = sbr.rel (%p155) target = $region16
        $region15: #{self_attention.1} parent=11 // pred_region
          _
        $region16: #{self_attention.1} parent=11 // pred_fallthru
          _
        // Predicated region
        $region17: #{self_attention.1} parent=11 // pred_check
          %p158 = pneg %p91
        $region18: #{self_attention.1} parent=11 // pred_check_branch
          %160 = sbr.rel (%p158) target = $region20
        $region19: #{self_attention.1} parent=11 // pred_region
          _
        $region20: #{self_attention.1} parent=11 // pred_fallthru
          _
        // Predicated region
        $region21: #{self_attention.1} parent=11 // pred_check
          %p161 = pneg %p112
        $region22: #{self_attention.1} parent=11 // pred_check_branch
          %163 = sbr.rel (%p161) target = $region24
        $region23: #{self_attention.1} parent=11 // pred_region
          _
        $region24: #{self_attention.1} parent=11 // pred_fallthru
          _
      $region12: #{self_attention.1} parent=5 // pred_fallthru
        _
      %p164 = scmp.lt.s32.totalorder %s11, 4
      // Predicated region
      $region25: #{self_attention.1} parent=5 // pred_check
        %p165 = pneg %p164
      $region26: #{self_attention.1} parent=5 // pred_check_branch
        %167 = sbr.rel (%p165) target = $region28
      $region27: #{self_attention.1} parent=5 // pred_region
        // Predicated region
        $region29: #{self_attention.1} parent=27 // pred_check
          %p168 = pneg %p43
        $region30: #{self_attention.1} parent=27 // pred_check_branch
          %170 = sbr.rel (%p168) target = $region32
        $region31: #{self_attention.1} parent=27 // pred_region
          %p171 = scmp.lt.s32.totalorder %s18, 1
          %s172 = scalar_select %p171, %s18, 1
          %s173 = smul.addr %s172, 8
          %s174 = smul.addr %s173, 8
          %s175 = scalar_lea.vmem %s0, %s174
        $region32: #{self_attention.1} parent=27 // pred_fallthru
          _
      $region28: #{self_attention.1} parent=5 // pred_fallthru
        _
      %p176 = scmp.le.s32.totalorder 1, %s11
      %p177 = scmp.lt.s32.totalorder %s11, 5
      %p178 = pnand %p176, %p177
      %p179 = pneg %p178
      // Predicated region
      $region33: #{self_attention.1} parent=5 // pred_check
        _
      $region34: #{self_attention.1} parent=5 // pred_check_branch
        %181 = sbr.rel (%p178) target = $region36
      $region35: #{self_attention.1} parent=5 // pred_region
        %s182 = ssub.s32 %s11, 1
        %p183 = scmp.lt.s32.totalorder %s20, 1
        %s184 = scalar_select %p183, %s20, 1
        %s185 = smul.addr %s184, 8
        %s186 = smul.addr %s185, 8
        %s187 = scalar_lea.vmem %s0, %s186
        %p188 = pneg %p49
        %p189 = pneg %p46
        %p190 = pneg %p70
        %p191 = pneg %p67
        %p192 = pneg %p91
        %p193 = pneg %p88
        %p194 = pneg %p112
        %p195 = pneg %p109
        %p196 = pneg %p140
        %p197 = pneg %p137
        %s198 = sand.u32 %s127, 1
        %s199 = sand.u32 %s127, 1
        %s200 = smul.addr %s199, 32
        %s201 = scalar_lea.vmem [#allocation4], %s200
        %p202 = scmp.lt.s32.totalorder %s20, 1
        %s203 = scalar_select %p202, %s20, 1
        %s204 = smul.addr %s203, 8
        %s205 = smul.addr %s204, 8
        %s206 = scalar_lea.vmem %s0, %s205
        %p208 = scmp.eq.s32.totalorder %s21, 0
        // Predicated region
        $region37: #{self_attention.1} parent=35 // pred_check
          %p209 = pneg %p208
        $region38: #{self_attention.1} parent=35 // pred_check_branch
          %211 = sbr.rel (%p209) target = $region40
        $region39: #{self_attention.1} parent=35 // pred_region
          %v212 = vld [vmem:[%s206] sm:$0xff]
          %v213 = vld [vmem:[%s206 + $0x8] sm:$0xff]
          %v214 = vld [vmem:[%s206 + $0x10] sm:$0xff]
          %v215 = vld [vmem:[%s206 + $0x18] sm:$0xff]
          %v216 = vld [vmem:[%s206 + $0x20] sm:$0xff]
          %v217 = vld [vmem:[%s206 + $0x28] sm:$0xff]
          %v218 = vld [vmem:[%s206 + $0x30] sm:$0xff]
          %v219 = vld [vmem:[%s206 + $0x38] sm:$0xff]
          %v220 = vpack.c.bf16 %v214, %v212
          %v221 = vpack.c.bf16 %v215, %v213
          %v222 = vpack.c.bf16 %v218, %v216
          %v223 = vpack.c.bf16 %v219, %v217
          %v224 = vld [vmem:[%s1] sm:$0xf]
          %v225 = vld [vmem:[%s1 + $0x4] sm:$0xf]
          %v226 = vld [vmem:[%s1 + $0x8] sm:$0xf]
          %v227 = vld [vmem:[%s1 + $0xc] sm:$0xf]
          %v228 = vld [vmem:[%s1 + $0x10] sm:$0xf]
          %v229 = vld [vmem:[%s1 + $0x14] sm:$0xf]
          %v230 = vld [vmem:[%s1 + $0x18] sm:$0xf]
          %v231 = vld [vmem:[%s1 + $0x1c] sm:$0xf]
          %v232 = vld [vmem:[%s1 + $0x20] sm:$0xf]
          %v233 = vld [vmem:[%s1 + $0x24] sm:$0xf]
          %v234 = vld [vmem:[%s2] sm:$0xff]
          %v235 = vld [vmem:[%s2 + $0x8] sm:$0xff]
          %v236 = vld [vmem:[%s2 + $0x10] sm:$0xff]
          %v237 = vld [vmem:[%s2 + $0x18] sm:$0xff]
          %v238 = vld [vmem:[%s2 + $0x20] sm:$0xff]
          %v239 = vld [vmem:[%s2 + $0x28] sm:$0xff]
          %v240 = vld [vmem:[%s2 + $0x30] sm:$0xff]
          %v241 = vld [vmem:[%s2 + $0x38] sm:$0xff]
          %v242 = vld [vmem:[%s2 + $0x40] sm:$0xff]
          %v243 = vld [vmem:[%s2 + $0x48] sm:$0xff]
          %245 = vset.pattern.permute.xlu0 0
          %246 = vperm.xlu0 %245, %v234
          %v247 = vpop.permute.xlu0 %246
          %250 = vset.pattern.permute.xlu0 0
          %251 = vperm.xlu0 %250, %v235
          %v252 = vpop.permute.xlu0 %251
          %255 = vset.pattern.permute.xlu0 0
          %256 = vperm.xlu0 %255, %v236
          %v257 = vpop.permute.xlu0 %256
          %260 = vset.pattern.permute.xlu0 0
          %261 = vperm.xlu0 %260, %v237
          %v262 = vpop.permute.xlu0 %261
          %265 = vset.pattern.permute.xlu0 0
          %266 = vperm.xlu0 %265, %v238
          %v267 = vpop.permute.xlu0 %266
          %270 = vset.pattern.permute.xlu0 0
          %271 = vperm.xlu0 %270, %v239
          %v272 = vpop.permute.xlu0 %271
          %275 = vset.pattern.permute.xlu0 0
          %276 = vperm.xlu0 %275, %v240
          %v277 = vpop.permute.xlu0 %276
          %280 = vset.pattern.permute.xlu0 0
          %281 = vperm.xlu0 %280, %v241
          %v282 = vpop.permute.xlu0 %281
          %285 = vset.pattern.permute.xlu0 0
          %286 = vperm.xlu0 %285, %v242
          %v287 = vpop.permute.xlu0 %286
          %290 = vset.pattern.permute.xlu0 0
          %291 = vperm.xlu0 %290, %v243
          %v292 = vpop.permute.xlu0 %291
          %v304 = vunpack.c.l.b16 %v224
          %v305 = vunpack.c.l.b16 %v225
          %v306 = vunpack.c.l.b16 %v226
          %v307 = vunpack.c.l.b16 %v227
          %v308 = vunpack.c.l.b16 %v228
          %v309 = vunpack.c.l.b16 %v229
          %v310 = vunpack.c.l.b16 %v230
          %v311 = vunpack.c.l.b16 %v231
          %v312 = vunpack.c.l.b16 %v232
          %v313 = vunpack.c.l.b16 %v233
          %v314 = vpack.c.b16 %v305, %v304
          %v315 = vpack.c.b16 %v307, %v306
          %v316 = vpack.c.b16 %v309, %v308
          %v317 = vpack.c.b16 %v311, %v310
          %v318 = vpack.c.b16 %v313, %v312
          %vm319 = vcmask 261120
          %v321 = vsel %vm319, %v314, 0
          %v324 = vsel %vm319, %v315, 0
          %v327 = vsel %vm319, %v316, 0
          %v330 = vsel %vm319, %v317, 0
          %v333 = vsel %vm319, %v318, 0
          %335 = vmatprep.subr.bf16.mxu0 0
          %336 = vmatpush1.bf16.msra.mxu0 0
          %337 = vmatprep.subr.bf16.mxu0 0
          %338 = vmatpush1.bf16.msra.mxu0 0
          %339 = vmatprep.subr.bf16.mxu0 0
          %340 = vmatpush1.bf16.msra.mxu0 0
          %341 = vmatprep.subr.bf16.mxu0 0
          %342 = vmatpush1.bf16.msra.mxu0 0
          %343 = vmatprep.subr.bf16.mxu0 0
          %344 = vmatpush1.bf16.msra.mxu0 0
          %345 = vmatprep.subr.bf16.mxu0 0
          %346 = vmatpush1.bf16.msra.mxu0 0
          %347 = vmatprep.subr.bf16.mxu0 %v223
          %348 = vmatpush1.bf16.msra.mxu0 %v222
          %349 = vmatprep.subr.bf16.mxu0 %v221
          %350 = vmatpush1.bf16.msra.mxu0 %v220
          %351 = vmatprep.subr.bf16.mxu0 0
          %352 = vmatpush2.bf16.msra.mxu0 0
          %353 = vmatprep.subr.bf16.mxu0 0
          %354 = vmatpush2.bf16.msra.mxu0 0
          %355 = vmatprep.subr.bf16.mxu0 0
          %356 = vmatpush2.bf16.msra.mxu0 0
          %357 = vmatprep.subr.bf16.mxu0 0
          %358 = vmatpush2.bf16.msra.mxu0 0
          %359 = vmatprep.subr.bf16.mxu0 0
          %360 = vmatpush2.bf16.msra.mxu0 0
          %361 = vmatprep.subr.bf16.mxu0 0
          %362 = vmatpush2.bf16.msra.mxu0 0
          %363 = vmatprep.subr.bf16.mxu0 0
          %364 = vmatpush2.bf16.msra.mxu0 0
          %365 = vmatprep.subr.bf16.mxu0 0
          %366 = vmatpush2.bf16.msra.mxu0 0
          %367 = vmatprep.mubr.bf16.mxu0 0
          %368 = vmatmul.mubr.bf16.gmra.mxu0 %v321
          %v369 = vpop.f32.mrf.mxu0
          %v370 = vadd.f32 %v247, %v369
          %v371 = vpop.f32.mrf.mxu0
          %v372 = vadd.f32 %v247, %v371
          %v373 = vpop.f32.mrf.mxu0
          %v374 = vadd.f32 %v252, %v373
          %v375 = vpop.f32.mrf.mxu0
          %v376 = vadd.f32 %v252, %v375
          %377 = vmatprep.mubr.bf16.mxu0 0
          %378 = vmatmul.mubr.bf16.gmra.mxu0 %v324
          %v379 = vpop.f32.mrf.mxu0
          %v380 = vadd.f32 %v257, %v379
          %v381 = vpop.f32.mrf.mxu0
          %v382 = vadd.f32 %v257, %v381
          %v383 = vpop.f32.mrf.mxu0
          %v384 = vadd.f32 %v262, %v383
          %v385 = vpop.f32.mrf.mxu0
          %v386 = vadd.f32 %v262, %v385
          %387 = vmatprep.mubr.bf16.mxu0 0
          %388 = vmatmul.mubr.bf16.gmra.mxu0 %v327
          %v389 = vpop.f32.mrf.mxu0
          %v390 = vadd.f32 %v267, %v389
          %v391 = vpop.f32.mrf.mxu0
          %v392 = vadd.f32 %v267, %v391
          %v393 = vpop.f32.mrf.mxu0
          %v394 = vadd.f32 %v272, %v393
          %v395 = vpop.f32.mrf.mxu0
          %v396 = vadd.f32 %v272, %v395
          %397 = vmatprep.mubr.bf16.mxu0 0
          %398 = vmatmul.mubr.bf16.gmra.mxu0 %v330
          %v399 = vpop.f32.mrf.mxu0
          %v400 = vadd.f32 %v277, %v399
          %v401 = vpop.f32.mrf.mxu0
          %v402 = vadd.f32 %v277, %v401
          %v403 = vpop.f32.mrf.mxu0
          %v404 = vadd.f32 %v282, %v403
          %v405 = vpop.f32.mrf.mxu0
          %v406 = vadd.f32 %v282, %v405
          %407 = vmatprep.mubr.bf16.mxu0 0
          %408 = vmatmul.mubr.bf16.gmra.mxu0 %v333
          %v409 = vpop.f32.mrf.mxu0
          %v410 = vadd.f32 %v287, %v409
          %v411 = vpop.f32.mrf.mxu0
          %v412 = vadd.f32 %v287, %v411
          %v413 = vpop.f32.mrf.mxu0
          %v414 = vadd.f32 %v292, %v413
          %v415 = vpop.f32.mrf.mxu0
          %v416 = vadd.f32 %v292, %v415
          %417 = vdwg.mxu0
          %v418 = vpack.c.bf16 %v374, %v370
          %v419 = vpack.c.bf16 %v376, %v372
          %v420 = vpack.c.bf16 %v384, %v380
          %v421 = vpack.c.bf16 %v386, %v382
          %v422 = vpack.c.bf16 %v394, %v390
          %v423 = vpack.c.bf16 %v396, %v392
          %v424 = vpack.c.bf16 %v404, %v400
          %v425 = vpack.c.bf16 %v406, %v402
          %v426 = vpack.c.bf16 %v414, %v410
          %v427 = vpack.c.bf16 %v416, %v412
          %v438 = vunpack.c.l.b16 %v418
          %v439 = vunpack.c.l.b16 %v419
          %v440 = vunpack.c.h.b16 %v418
          %v441 = vunpack.c.h.b16 %v419
          %v442 = vunpack.c.l.b16 %v420
          %v443 = vunpack.c.l.b16 %v421
          %v444 = vunpack.c.h.b16 %v420
          %v445 = vunpack.c.h.b16 %v421
          %v446 = vunpack.c.l.b16 %v422
          %v447 = vunpack.c.l.b16 %v423
          %v448 = vunpack.c.h.b16 %v422
          %v449 = vunpack.c.h.b16 %v423
          %v450 = vunpack.c.l.b16 %v424
          %v451 = vunpack.c.l.b16 %v425
          %v452 = vunpack.c.h.b16 %v424
          %v453 = vunpack.c.h.b16 %v425
          %v454 = vunpack.c.l.b16 %v426
          %v455 = vunpack.c.l.b16 %v427
          %v456 = vunpack.c.h.b16 %v426
          %v457 = vunpack.c.h.b16 %v427
          %v458 = vpack.c.b16 %v439, %v438
          %v459 = vpack.c.b16 %v441, %v440
          %v460 = vpack.c.b16 %v443, %v442
          %v461 = vpack.c.b16 %v445, %v444
          %v462 = vpack.c.b16 %v447, %v446
          %v463 = vpack.c.b16 %v449, %v448
          %v464 = vpack.c.b16 %v451, %v450
          %v465 = vpack.c.b16 %v453, %v452
          %v466 = vpack.c.b16 %v455, %v454
          %v467 = vpack.c.b16 %v457, %v456
          %478 = vst [vmem:[#allocation2] sm:$0xff] %v458
          %479 = vst [vmem:[#allocation2 + $0x8] sm:$0xff] %v459
          %480 = vst [vmem:[#allocation2 + $0x10] sm:$0xff] %v460
          %481 = vst [vmem:[#allocation2 + $0x18] sm:$0xff] %v461
          %482 = vst [vmem:[#allocation2 + $0x20] sm:$0xff] %v462
          %483 = vst [vmem:[#allocation2 + $0x28] sm:$0xff] %v463
          %484 = vst [vmem:[#allocation2 + $0x30] sm:$0xff] %v464
          %485 = vst [vmem:[#allocation2 + $0x38] sm:$0xff] %v465
          %486 = vst [vmem:[#allocation2 + $0x40] sm:$0xff] %v466
          %487 = vst [vmem:[#allocation2 + $0x48] sm:$0xff] %v467
        $region40: #{self_attention.1} parent=35 // pred_fallthru
          _
        %s488 = smul.u32 %s21, 128
        %s489 = sshra.s32 %s488, 7
        %s490 = sand.u32 %s488, 127
        %s491 = smul.addr %s489, 4
        %s492 = scalar_lea.vmem [#allocation2], %s491
        %v493 = vld [vmem:[%s492] sm:$0xf]
        %v494 = vld [vmem:[%s492 + $0x8] sm:$0xf]
        %v495 = vld [vmem:[#allocation2 + $0x10] sm:$0xff]
        %v496 = vld [vmem:[#allocation2 + $0x18] sm:$0xff]
        %v497 = vld [vmem:[#allocation2 + $0x20] sm:$0xff]
        %v498 = vld [vmem:[#allocation2 + $0x28] sm:$0xff]
        %v499 = vld [vmem:[#allocation2 + $0x30] sm:$0xff]
        %v500 = vld [vmem:[#allocation2 + $0x38] sm:$0xff]
        %v501 = vld [vmem:[#allocation2 + $0x40] sm:$0xff]
        %v502 = vld [vmem:[#allocation2 + $0x48] sm:$0xff]
        %v505 = vunpack.c.l.b16 %v493
        %v506 = vunpack.c.l.b16 %v494
        %v507 = vpack.c.b16 %v506, %v505
        %509 = vxpose.xlu0.c.b16.start [1/8] %v507, 128
        %510 = vxpose.xlu0.c.b16.cont [2/8] 0, 128
        %511 = vxpose.xlu0.c.b16.cont [3/8] 0, 128
        %512 = vxpose.xlu0.c.b16.cont [4/8] 0, 128
        %513 = vxpose.xlu0.c.b16.cont [5/8] 0, 128
        %514 = vxpose.xlu0.c.b16.cont [6/8] 0, 128
        %515 = vxpose.xlu0.c.b16.cont [7/8] 0, 128
        %516 = vxpose.xlu0.c.b16.end [8/8] 0, 128
        %v517 = vpop.trf.xlu0
        %v518 = vpop.trf.xlu0
        %v519 = vpop.trf.xlu0
        %v520 = vpop.trf.xlu0
        %v521 = vpop.trf.xlu0
        %v522 = vpop.trf.xlu0
        %v523 = vpop.trf.xlu0
        %v524 = vpop.trf.xlu0
        %v527 = vunpack.c.l.b16 %v495
        %v528 = vunpack.c.h.b16 %v495
        %v529 = vunpack.c.l.b16 %v496
        %v530 = vunpack.c.h.b16 %v496
        %v531 = vpack.c.b16 %v529, %v527
        %v532 = vpack.c.b16 %v530, %v528
        %vm535 = vcmask 130048
        %v537 = vsel %vm535, %v517, 0
        %v540 = vsel %vm535, %v518, 0
        %v543 = vsel %vm535, %v519, 0
        %v546 = vsel %vm535, %v520, 0
        %v549 = vsel %vm535, %v521, 0
        %v552 = vsel %vm535, %v522, 0
        %v555 = vsel %vm535, %v523, 0
        %v558 = vsel %vm535, %v524, 0
        %560 = vmatprep.subr.bf16.mxu0 0
        %561 = vmatpush1.bf16.msra.mxu0 0
        %562 = vmatprep.subr.bf16.mxu0 0
        %563 = vmatpush1.bf16.msra.mxu0 0
        %564 = vmatprep.subr.bf16.mxu0 0
        %565 = vmatpush1.bf16.msra.mxu0 0
        %566 = vmatprep.subr.bf16.mxu0 0
        %567 = vmatpush1.bf16.msra.mxu0 0
        %568 = vmatprep.subr.bf16.mxu0 0
        %569 = vmatpush1.bf16.msra.mxu0 0
        %570 = vmatprep.subr.bf16.mxu0 0
        %571 = vmatpush1.bf16.msra.mxu0 0
        %572 = vmatprep.subr.bf16.mxu0 0
        %573 = vmatpush1.bf16.msra.mxu0 0
        %574 = vmatprep.subr.bf16.mxu0 %v532
        %575 = vmatpush1.bf16.msra.mxu0 %v531
        %576 = vmatprep.subr.bf16.mxu0 0
        %577 = vmatpush2.bf16.msra.mxu0 0
        %578 = vmatprep.subr.bf16.mxu0 0
        %579 = vmatpush2.bf16.msra.mxu0 0
        %580 = vmatprep.subr.bf16.mxu0 0
        %581 = vmatpush2.bf16.msra.mxu0 0
        %582 = vmatprep.subr.bf16.mxu0 0
        %583 = vmatpush2.bf16.msra.mxu0 0
        %584 = vmatprep.subr.bf16.mxu0 0
        %585 = vmatpush2.bf16.msra.mxu0 0
        %586 = vmatprep.subr.bf16.mxu0 0
        %587 = vmatpush2.bf16.msra.mxu0 0
        %588 = vmatprep.subr.bf16.mxu0 0
        %589 = vmatpush2.bf16.msra.mxu0 0
        %590 = vmatprep.subr.bf16.mxu0 0
        %591 = vmatpush2.bf16.msra.mxu0 0
        %592 = vmatprep.mubr.bf16.mxu0 0
        %593 = vmatmul.mubr.bf16.gmra.mxu0 %v537
        %v594 = vpop.f32.mrf.mxu0
        %v595 = vadd.f32 0.0, %v594
        %v596 = vpop.f32.mrf.mxu0
        %v597 = vadd.f32 0.0, %v596
        %v598 = vpop.f32.mrf.mxu0
        %v599 = vadd.f32 0.0, %v598
        %v600 = vpop.f32.mrf.mxu0
        %v601 = vadd.f32 0.0, %v600
        %602 = vmatprep.mubr.bf16.mxu0 0
        %603 = vmatmul.mubr.bf16.gmra.mxu0 %v540
        %v604 = vpop.f32.mrf.mxu0
        %v605 = vadd.f32 0.0, %v604
        %v606 = vpop.f32.mrf.mxu0
        %v607 = vadd.f32 0.0, %v606
        %v608 = vpop.f32.mrf.mxu0
        %v609 = vadd.f32 0.0, %v608
        %v610 = vpop.f32.mrf.mxu0
        %v611 = vadd.f32 0.0, %v610
        %612 = vmatprep.mubr.bf16.mxu0 0
        %613 = vmatmul.mubr.bf16.gmra.mxu0 %v543
        %v614 = vpop.f32.mrf.mxu0
        %v615 = vadd.f32 0.0, %v614
        %v616 = vpop.f32.mrf.mxu0
        %v617 = vadd.f32 0.0, %v616
        %v618 = vpop.f32.mrf.mxu0
        %v619 = vadd.f32 0.0, %v618
        %v620 = vpop.f32.mrf.mxu0
        %v621 = vadd.f32 0.0, %v620
        %622 = vmatprep.mubr.bf16.mxu0 0
        %623 = vmatmul.mubr.bf16.gmra.mxu0 %v546
        %v624 = vpop.f32.mrf.mxu0
        %v625 = vadd.f32 0.0, %v624
        %v626 = vpop.f32.mrf.mxu0
        %v627 = vadd.f32 0.0, %v626
        %v628 = vpop.f32.mrf.mxu0
        %v629 = vadd.f32 0.0, %v628
        %v630 = vpop.f32.mrf.mxu0
        %v631 = vadd.f32 0.0, %v630
        %632 = vmatprep.mubr.bf16.mxu0 0
        %633 = vmatmul.mubr.bf16.gmra.mxu0 %v549
        %v634 = vpop.f32.mrf.mxu0
        %v635 = vadd.f32 0.0, %v634
        %v636 = vpop.f32.mrf.mxu0
        %v637 = vadd.f32 0.0, %v636
        %v638 = vpop.f32.mrf.mxu0
        %v639 = vadd.f32 0.0, %v638
        %v640 = vpop.f32.mrf.mxu0
        %v641 = vadd.f32 0.0, %v640
        %642 = vmatprep.mubr.bf16.mxu0 0
        %643 = vmatmul.mubr.bf16.gmra.mxu0 %v552
        %v644 = vpop.f32.mrf.mxu0
        %v645 = vadd.f32 0.0, %v644
        %v646 = vpop.f32.mrf.mxu0
        %v647 = vadd.f32 0.0, %v646
        %v648 = vpop.f32.mrf.mxu0
        %v649 = vadd.f32 0.0, %v648
        %v650 = vpop.f32.mrf.mxu0
        %v651 = vadd.f32 0.0, %v650
        %652 = vmatprep.mubr.bf16.mxu0 0
        %653 = vmatmul.mubr.bf16.gmra.mxu0 %v555
        %v654 = vpop.f32.mrf.mxu0
        %v655 = vadd.f32 0.0, %v654
        %v656 = vpop.f32.mrf.mxu0
        %v657 = vadd.f32 0.0, %v656
        %v658 = vpop.f32.mrf.mxu0
        %v659 = vadd.f32 0.0, %v658
        %v660 = vpop.f32.mrf.mxu0
        %v661 = vadd.f32 0.0, %v660
        %662 = vmatprep.mubr.bf16.mxu0 0
        %663 = vmatmul.mubr.bf16.gmra.mxu0 %v558
        %v664 = vpop.f32.mrf.mxu0
        %v665 = vadd.f32 0.0, %v664
        %v666 = vpop.f32.mrf.mxu0
        %v667 = vadd.f32 0.0, %v666
        %v668 = vpop.f32.mrf.mxu0
        %v669 = vadd.f32 0.0, %v668
        %v670 = vpop.f32.mrf.mxu0
        %v671 = vadd.f32 0.0, %v670
        %672 = vdwg.mxu0
        %v673 = vmax.f32 %v595, %v597
        %674 = vmax.xlane.f32.xlu0 %v673
        %v675 = vpop.xlane.xlu0 %674
        %v676 = vmax.f32 %v599, %v601
        %677 = vmax.xlane.f32.xlu0 %v676
        %v678 = vpop.xlane.xlu0 %677
        %v679 = vmax.f32 %v605, %v607
        %680 = vmax.xlane.f32.xlu0 %v679
        %v681 = vpop.xlane.xlu0 %680
        %v682 = vmax.f32 %v609, %v611
        %683 = vmax.xlane.f32.xlu0 %v682
        %v684 = vpop.xlane.xlu0 %683
        %v685 = vmax.f32 %v615, %v617
        %686 = vmax.xlane.f32.xlu0 %v685
        %v687 = vpop.xlane.xlu0 %686
        %v688 = vmax.f32 %v619, %v621
        %689 = vmax.xlane.f32.xlu0 %v688
        %v690 = vpop.xlane.xlu0 %689
        %v691 = vmax.f32 %v625, %v627
        %692 = vmax.xlane.f32.xlu0 %v691
        %v693 = vpop.xlane.xlu0 %692
        %v694 = vmax.f32 %v629, %v631
        %695 = vmax.xlane.f32.xlu0 %v694
        %v696 = vpop.xlane.xlu0 %695
        %v697 = vmax.f32 %v635, %v637
        %698 = vmax.xlane.f32.xlu0 %v697
        %v699 = vpop.xlane.xlu0 %698
        %v700 = vmax.f32 %v639, %v641
        %701 = vmax.xlane.f32.xlu0 %v700
        %v702 = vpop.xlane.xlu0 %701
        %v703 = vmax.f32 %v645, %v647
        %704 = vmax.xlane.f32.xlu0 %v703
        %v705 = vpop.xlane.xlu0 %704
        %v706 = vmax.f32 %v649, %v651
        %707 = vmax.xlane.f32.xlu0 %v706
        %v708 = vpop.xlane.xlu0 %707
        %v709 = vmax.f32 %v655, %v657
        %710 = vmax.xlane.f32.xlu0 %v709
        %v711 = vpop.xlane.xlu0 %710
        %v712 = vmax.f32 %v659, %v661
        %713 = vmax.xlane.f32.xlu0 %v712
        %v714 = vpop.xlane.xlu0 %713
        %v715 = vmax.f32 %v665, %v667
        %716 = vmax.xlane.f32.xlu0 %v715
        %v717 = vpop.xlane.xlu0 %716
        %v718 = vmax.f32 %v669, %v671
        %719 = vmax.xlane.f32.xlu0 %v718
        %v720 = vpop.xlane.xlu0 %719
        %v721 = vsub.f32 %v595, %v675
        %v722 = vsub.f32 %v597, %v675
        %v723 = vsub.f32 %v599, %v678
        %v724 = vsub.f32 %v601, %v678
        %v725 = vsub.f32 %v605, %v681
        %v726 = vsub.f32 %v607, %v681
        %v727 = vsub.f32 %v609, %v684
        %v728 = vsub.f32 %v611, %v684
        %v729 = vsub.f32 %v615, %v687
        %v730 = vsub.f32 %v617, %v687
        %v731 = vsub.f32 %v619, %v690
        %v732 = vsub.f32 %v621, %v690
        %v733 = vsub.f32 %v625, %v693
        %v734 = vsub.f32 %v627, %v693
        %v735 = vsub.f32 %v629, %v696
        %v736 = vsub.f32 %v631, %v696
        %v737 = vsub.f32 %v635, %v699
        %v738 = vsub.f32 %v637, %v699
        %v739 = vsub.f32 %v639, %v702
        %v740 = vsub.f32 %v641, %v702
        %v741 = vsub.f32 %v645, %v705
        %v742 = vsub.f32 %v647, %v705
        %v743 = vsub.f32 %v649, %v708
        %v744 = vsub.f32 %v651, %v708
        %v745 = vsub.f32 %v655, %v711
        %v746 = vsub.f32 %v657, %v711
        %v747 = vsub.f32 %v659, %v714
        %v748 = vsub.f32 %v661, %v714
        %v749 = vsub.f32 %v665, %v717
        %v750 = vsub.f32 %v667, %v717
        %v751 = vsub.f32 %v669, %v720
        %v752 = vsub.f32 %v671, %v720
        %v753 = vmul.f32 %v721, 1.442695
        %v754 = vpow.pop %v753
        %v755 = vmul.f32 %v722, 1.442695
        %v756 = vpow.pop %v755
        %v757 = vmul.f32 %v723, 1.442695
        %v758 = vpow.pop %v757
        %v759 = vmul.f32 %v724, 1.442695
        %v760 = vpow.pop %v759
        %v761 = vmul.f32 %v725, 1.442695
        %v762 = vpow.pop %v761
        %v763 = vmul.f32 %v726, 1.442695
        %v764 = vpow.pop %v763
        %v765 = vmul.f32 %v727, 1.442695
        %v766 = vpow.pop %v765
        %v767 = vmul.f32 %v728, 1.442695
        %v768 = vpow.pop %v767
        %v769 = vmul.f32 %v729, 1.442695
        %v770 = vpow.pop %v769
        %v771 = vmul.f32 %v730, 1.442695
        %v772 = vpow.pop %v771
        %v773 = vmul.f32 %v731, 1.442695
        %v774 = vpow.pop %v773
        %v775 = vmul.f32 %v732, 1.442695
        %v776 = vpow.pop %v775
        %v777 = vmul.f32 %v733, 1.442695
        %v778 = vpow.pop %v777
        %v779 = vmul.f32 %v734, 1.442695
        %v780 = vpow.pop %v779
        %v781 = vmul.f32 %v735, 1.442695
        %v782 = vpow.pop %v781
        %v783 = vmul.f32 %v736, 1.442695
        %v784 = vpow.pop %v783
        %v785 = vmul.f32 %v737, 1.442695
        %v786 = vpow.pop %v785
        %v787 = vmul.f32 %v738, 1.442695
        %v788 = vpow.pop %v787
        %v789 = vmul.f32 %v739, 1.442695
        %v790 = vpow.pop %v789
        %v791 = vmul.f32 %v740, 1.442695
        %v792 = vpow.pop %v791
        %v793 = vmul.f32 %v741, 1.442695
        %v794 = vpow.pop %v793
        %v795 = vmul.f32 %v742, 1.442695
        %v796 = vpow.pop %v795
        %v797 = vmul.f32 %v743, 1.442695
        %v798 = vpow.pop %v797
        %v799 = vmul.f32 %v744, 1.442695
        %v800 = vpow.pop %v799
        %v801 = vmul.f32 %v745, 1.442695
        %v802 = vpow.pop %v801
        %v803 = vmul.f32 %v746, 1.442695
        %v804 = vpow.pop %v803
        %v805 = vmul.f32 %v747, 1.442695
        %v806 = vpow.pop %v805
        %v807 = vmul.f32 %v748, 1.442695
        %v808 = vpow.pop %v807
        %v809 = vmul.f32 %v749, 1.442695
        %v810 = vpow.pop %v809
        %v811 = vmul.f32 %v750, 1.442695
        %v812 = vpow.pop %v811
        %v813 = vmul.f32 %v751, 1.442695
        %v814 = vpow.pop %v813
        %v815 = vmul.f32 %v752, 1.442695
        %v816 = vpow.pop %v815
        %v817 = vpack.c.bf16 %v758, %v754
        %v818 = vpack.c.bf16 %v760, %v756
        %v819 = vpack.c.bf16 %v766, %v762
        %v820 = vpack.c.bf16 %v768, %v764
        %v821 = vpack.c.bf16 %v774, %v770
        %v822 = vpack.c.bf16 %v776, %v772
        %v823 = vpack.c.bf16 %v782, %v778
        %v824 = vpack.c.bf16 %v784, %v780
        %v825 = vpack.c.bf16 %v790, %v786
        %v826 = vpack.c.bf16 %v792, %v788
        %v827 = vpack.c.bf16 %v798, %v794
        %v828 = vpack.c.bf16 %v800, %v796
        %v829 = vpack.c.bf16 %v806, %v802
        %v830 = vpack.c.bf16 %v808, %v804
        %v831 = vpack.c.bf16 %v814, %v810
        %v832 = vpack.c.bf16 %v816, %v812
        %v839 = vunpack.c.l.b16 %v497
        %v840 = vunpack.c.h.b16 %v497
        %v841 = vunpack.c.l.b16 %v498
        %v842 = vunpack.c.h.b16 %v498
        %v843 = vunpack.c.l.b16 %v499
        %v844 = vunpack.c.h.b16 %v499
        %v845 = vunpack.c.l.b16 %v500
        %v846 = vunpack.c.h.b16 %v500
        %v847 = vunpack.c.l.b16 %v501
        %v848 = vunpack.c.h.b16 %v501
        %v849 = vunpack.c.l.b16 %v502
        %v850 = vunpack.c.h.b16 %v502
        %v851 = vpack.c.b16 %v841, %v839
        %v852 = vpack.c.b16 %v842, %v840
        %v853 = vpack.c.b16 %v845, %v843
        %v854 = vpack.c.b16 %v846, %v844
        %v855 = vpack.c.b16 %v849, %v847
        %v856 = vpack.c.b16 %v850, %v848
        %863 = vmatprep.subr.bf16.mxu0 %v832
        %864 = vmatpush1.bf16.xpose.msra.mxu0 %v831
        %865 = vmatprep.subr.bf16.mxu0 %v830
        %866 = vmatpush1.bf16.xpose.msra.mxu0 %v829
        %867 = vmatprep.subr.bf16.mxu0 %v828
        %868 = vmatpush1.bf16.xpose.msra.mxu0 %v827
        %869 = vmatprep.subr.bf16.mxu0 %v826
        %870 = vmatpush1.bf16.xpose.msra.mxu0 %v825
        %871 = vmatprep.subr.bf16.mxu0 %v824
        %872 = vmatpush1.bf16.xpose.msra.mxu0 %v823
        %873 = vmatprep.subr.bf16.mxu0 %v822
        %874 = vmatpush1.bf16.xpose.msra.mxu0 %v821
        %875 = vmatprep.subr.bf16.mxu0 %v820
        %876 = vmatpush1.bf16.xpose.msra.mxu0 %v819
        %877 = vmatprep.subr.bf16.mxu0 %v818
        %878 = vmatpush1.bf16.xpose.msra.mxu0 %v817
        %879 = vmatprep.subr.bf16.mxu0 0
        %880 = vmatpush2.bf16.xpose.msra.mxu0 0
        %881 = vmatprep.subr.bf16.mxu0 0
        %882 = vmatpush2.bf16.xpose.msra.mxu0 0
        %883 = vmatprep.subr.bf16.mxu0 0
        %884 = vmatpush2.bf16.xpose.msra.mxu0 0
        %885 = vmatprep.subr.bf16.mxu0 0
        %886 = vmatpush2.bf16.xpose.msra.mxu0 0
        %887 = vmatprep.subr.bf16.mxu0 0
        %888 = vmatpush2.bf16.xpose.msra.mxu0 0
        %889 = vmatprep.subr.bf16.mxu0 0
        %890 = vmatpush2.bf16.xpose.msra.mxu0 0
        %891 = vmatprep.subr.bf16.mxu0 0
        %892 = vmatpush2.bf16.xpose.msra.mxu0 0
        %893 = vmatprep.subr.bf16.mxu0 0
        %894 = vmatpush2.bf16.xpose.msra.mxu0 0
        %895 = vmatprep.mubr.bf16.mxu0 %v852
        %896 = vmatmul.mubr.bf16.gmra.mxu0 %v851
        %v897 = vpop.f32.mrf.mxu0
        %v898 = vadd.f32 0.0, %v897
        %v899 = vpop.f32.mrf.mxu0
        %v900 = vpop.f32.mrf.mxu0
        %v901 = vadd.f32 0.0, %v900
        %v902 = vpop.f32.mrf.mxu0
        %903 = vmatprep.mubr.bf16.mxu0 %v854
        %904 = vmatmul.mubr.bf16.gmra.mxu0 %v853
        %v905 = vpop.f32.mrf.mxu0
        %v906 = vadd.f32 0.0, %v905
        %v907 = vpop.f32.mrf.mxu0
        %v908 = vpop.f32.mrf.mxu0
        %v909 = vadd.f32 0.0, %v908
        %v910 = vpop.f32.mrf.mxu0
        %911 = vmatprep.mubr.bf16.mxu0 %v856
        %912 = vmatmul.mubr.bf16.gmra.mxu0 %v855
        %v913 = vpop.f32.mrf.mxu0
        %v914 = vadd.f32 0.0, %v913
        %v915 = vpop.f32.mrf.mxu0
        %v916 = vpop.f32.mrf.mxu0
        %v917 = vpop.f32.mrf.mxu0
        %918 = vdwg.mxu0
        %v919 = vrcp.pop %v914
        %v920 = vlaneseq
        %v921 = vshrl.u32 %v920, 7
        %v922 = vsub.s32 0, %v921
        %v923 = vrot.slane %v919, %v922
        %v924 = vmul.f32 %v898, %v923
        %v925 = vmul.f32 %v901, %v923
        %v926 = vmul.f32 %v906, %v923
        %v927 = vmul.f32 %v909, %v923
        %s928 = smul.addr %s489, 8
        %s929 = scalar_lea.vmem %s206, %s928
        %v930 = vld [vmem:[%s929] sm:$0xff]
        %v931 = vld [vmem:[%s929 + $0x10] sm:$0xff]
        %v932 = vld [vmem:[%s929 + $0x20] sm:$0xff]
        %v933 = vld [vmem:[%s929 + $0x30] sm:$0xff]
        %s934 = sld [smem:[#allocation3]]
        %v935 = vstv %s934
        %v936 = vmul.f32 %v935, %v924
        %v937 = vmul.f32 %v935, %v925
        %v938 = vmul.f32 %v935, %v926
        %v939 = vmul.f32 %v935, %v927
        %v940 = vadd.f32 %v936, %v930
        %v941 = vadd.f32 %v937, %v931
        %v942 = vadd.f32 %v938, %v932
        %v943 = vadd.f32 %v939, %v933
        %944 = vst [vmem:[%s201] sm:$0xff] %v940
        %945 = vst [vmem:[%s201 + $0x8] sm:$0xff] %v941
        %946 = vst [vmem:[%s201 + $0x10] sm:$0xff] %v942
        %947 = vst [vmem:[%s201 + $0x18] sm:$0xff] %v943
        %s948 = sand.u32 %s127, 1
        %s949 = sand.u32 %s127, 1
        %s950 = smul.addr %s949, 32
        %s951 = scalar_lea.vmem [#allocation4], %s950
        // Predicated region
        $region41: #{self_attention.1} parent=35 // pred_check
          %p952 = pneg %p137
        $region42: #{self_attention.1} parent=35 // pred_check_branch
          %954 = sbr.rel (%p952) target = $region44
        $region43: #{self_attention.1} parent=35 // pred_region
          %s955 = smul.addr %s20, 8
          %s956 = sadd.s32 %s21, %s955
          %s957 = smul.addr %s956, 8
          %s958 = scalar_lea.vmem %s4, %s957
          // Predicated region
          $region45: #{self_attention.1} parent=43 // pred_check
            _
          $region46: #{self_attention.1} parent=43 // pred_check_branch
            %960 = sbr.rel (0) target = $region48
          $region47: #{self_attention.1} parent=43 // pred_region
            // Predicated region
            $region49: #{self_attention.1} parent=47 // pred_check
              _
            $region50: #{self_attention.1} parent=47 // pred_check_branch
              %962 = sbr.rel (0) target = $region52
            $region51: #{self_attention.1} parent=47 // pred_region
              // Predicated region
              $region64: #{self_attention.1} parent=51 // pred_check
                _
              $region65: #{self_attention.1} parent=51 // pred_check_branch
                %984 = sbr.rel (0) target = $region67
              $region66: #{self_attention.1} parent=51 // pred_region
                loop: start=0, step=1, limit=1
                $region68: #{self_attention.1} parent=66 // loop_pre_header
                  _
                $region69: #{self_attention.1} parent=66 // loop_header
                  %s986 = sphi 0, %s990
                  %p987 = scmp.ge.s32.totalorder %s986, 1
                  %s991 = sphi %s951, %s951
                  %s992 = sphi %s958, %s958
                $region70: #{self_attention.1} parent=66 // loop_header_branch
                  %989 = sbr.rel (%p987) target = $region74
                $region71: #{self_attention.1} parent=66 // loop_body
                  %v993 = vld [vmem:[%s991] sm:$0xff]
                  %994 = vst [vmem:[%s992] sm:$0xff] %v993
                  %v995 = vld [vmem:[%s991 + $0x8] sm:$0xff]
                  %996 = vst [vmem:[%s992 + $0x10] sm:$0xff] %v995
                  %v997 = vld [vmem:[%s991 + $0x10] sm:$0xff]
                  %998 = vst [vmem:[%s992 + $0x20] sm:$0xff] %v997
                  %v999 = vld [vmem:[%s991 + $0x18] sm:$0xff]
                  %1000 = vst [vmem:[%s992 + $0x30] sm:$0xff] %v999
                $region72: #{self_attention.1} parent=66 // loop_footer
                  %s990 = sadd.s32 1, %s986
                $region73: #{self_attention.1} parent=66 // loop_footer_branch
                  %985 = sbr.rel target = $region69
                $region74: #{self_attention.1} parent=66 // loop_exit
                  _
              $region67: #{self_attention.1} parent=51 // pred_fallthru
                _
              // Predicated region
              $region75: #{self_attention.1} parent=51 // pred_check
                _
              $region76: #{self_attention.1} parent=51 // pred_check_branch
                %1002 = sbr.rel target = $region78
              $region77: #{self_attention.1} parent=51 // pred_region
                _
              $region78: #{self_attention.1} parent=51 // pred_fallthru
                _
            $region52: #{self_attention.1} parent=47 // pred_fallthru
              _
            // Predicated region
            $region53: #{self_attention.1} parent=47 // pred_check
              _
            $region54: #{self_attention.1} parent=47 // pred_check_branch
              %964 = sbr.rel target = $region56
            $region55: #{self_attention.1} parent=47 // pred_region
              %s966 = ssub.s32 256, 1
              loop: start=0, step=1, limit=1
              $region57: #{self_attention.1} parent=55 // loop_pre_header
                _
              $region58: #{self_attention.1} parent=55 // loop_header
                %s968 = sphi 0, %s972
                %p969 = scmp.ge.s32.totalorder %s968, 1
                %s973 = sphi %s951, %s951
                %s974 = sphi %s958, %s958
              $region59: #{self_attention.1} parent=55 // loop_header_branch
                %971 = sbr.rel (%p969) target = $region63
              $region60: #{self_attention.1} parent=55 // loop_body
                %v975 = vld [vmem:[%s973] sm:%s966]
                %976 = vst [vmem:[%s974] sm:%s966] %v975
                %v977 = vld [vmem:[%s973 + $0x8] sm:%s966]
                %978 = vst [vmem:[%s974 + $0x10] sm:%s966] %v977
                %v979 = vld [vmem:[%s973 + $0x10] sm:%s966]
                %980 = vst [vmem:[%s974 + $0x20] sm:%s966] %v979
                %v981 = vld [vmem:[%s973 + $0x18] sm:%s966]
                %982 = vst [vmem:[%s974 + $0x30] sm:%s966] %v981
              $region61: #{self_attention.1} parent=55 // loop_footer
                %s972 = sadd.s32 1, %s968
              $region62: #{self_attention.1} parent=55 // loop_footer_branch
                %967 = sbr.rel target = $region58
              $region63: #{self_attention.1} parent=55 // loop_exit
                _
            $region56: #{self_attention.1} parent=47 // pred_fallthru
              _
          $region48: #{self_attention.1} parent=43 // pred_fallthru
            _
          %1003 = vnop
        $region44: #{self_attention.1} parent=35 // pred_fallthru
          _
      $region36: #{self_attention.1} parent=5 // pred_fallthru
        _
      %p1004 = scmp.le.s32.totalorder 2, %s11
      // Predicated region
      $region79: #{self_attention.1} parent=5 // pred_check
        %p1005 = pneg %p1004
      $region80: #{self_attention.1} parent=5 // pred_check_branch
        %1007 = sbr.rel (%p1005) target = $region82
      $region81: #{self_attention.1} parent=5 // pred_region
        %s1008 = ssub.s32 %s11, 2
        // Predicated region
        $region83: #{self_attention.1} parent=81 // pred_check
          %p1009 = pneg %p143
        $region84: #{self_attention.1} parent=81 // pred_check_branch
          %1011 = sbr.rel (%p1009) target = $region86
        $region85: #{self_attention.1} parent=81 // pred_region
          %s1012 = sand.u32 %s128, 1
          %s1013 = sand.u32 %s128, 1
          %s1014 = smul.addr %s1013, 32
          %s1015 = scalar_lea.vmem [#allocation4], %s1014
        $region86: #{self_attention.1} parent=81 // pred_fallthru
          _
      $region82: #{self_attention.1} parent=5 // pred_fallthru
        _
    $region6: #{self_attention.1} parent=1 // loop_footer
      %s15 = sadd.s32 1, %s11
    $region7: #{self_attention.1} parent=1 // loop_footer_branch
      %10 = sbr.rel target = $region3
    $region8: #{self_attention.1} parent=1 // loop_exit
      _

</llo_original>
